<compile_context>
chip_gen: v5e
topology: v5e:2x2
jax: 0.10.0
libtpu: 0.0.40
codegen_flags: <defaults>
</compile_context>

<pallas_src>
import functools

import numpy as np
import jax
import jax.numpy as jnp
from jax.experimental import pallas as pl
from jax.experimental.pallas import tpu as pltpu


# ----------------------------------------------------------------------------
# Fused kernel: conv1 + FiLM + bn1 + relu + conv2 + FiLM + bn2 + residual + relu
# ----------------------------------------------------------------------------
def _block_kernel(expand_residual, Btile, H, *refs):
    if expand_residual:
        xpr_ref, sbv_ref, w1_ref, w2_ref, we_ref, out_ref, y1_ref = refs
    else:
        xpr_ref, sbv_ref, w1_ref, w2_ref, out_ref, y1_ref = refs
        we_ref = None

    f32 = jnp.float32
    WCin = xpr_ref.shape[2]
    WCout = out_ref.shape[2]
    M = Btile * H

    xpr = xpr_ref[...]                      # (Btile, H+2, W*Cin)  bf16, rows zero-padded
    sbv = sbv_ref[...]                      # (Btile, 4,   W*Cout) f32: A1, C1, A2, C2

    def conv_rows(slc, w_ref):
        # Running accumulation over the 3 ky taps (MXU-result accumulation on v7x).
        acc = jnp.dot(slc(0), w_ref[0], preferred_element_type=f32)
        acc = acc + jnp.dot(slc(1), w_ref[1], preferred_element_type=f32)
        acc = acc + jnp.dot(slc(2), w_ref[2], preferred_element_type=f32)
        return acc.reshape(Btile, H, WCout)

    # ---- stage 1: y1 = relu(conv1(x) * A1 + C1) ------------------------------
    acc1 = conv_rows(lambda k: xpr[:, k:k + H, :].reshape(M, WCin), w1_ref)
    y1 = jnp.maximum(acc1 * sbv[:, 0:1, :] + sbv[:, 1:2, :], 0.0)     # (Btile, H, W*Cout) f32

    # Row-padded y1 stays in VMEM (bf16 feeds the stage-2 MXU); only the two
    # halo rows are zeroed, EVERY step (never gate on program_id: that breaks
    # under 'parallel' megacore sharding on v7x).
    zrow = jnp.zeros((Btile, 1, WCout), y1_ref.dtype)
    y1_ref[:, 0:1, :] = zrow
    y1_ref[:, H + 1:H + 2, :] = zrow
    y1_ref[:, 1:H + 1, :] = y1.astype(y1_ref.dtype)

    # ---- stage 2: z = conv2(y1) * A2 + C2 ------------------------------------
    y1p = y1_ref[...]                       # (Btile, H+2, W*Cout) bf16
    acc2 = conv_rows(lambda k: y1p[:, k:k + H, :].reshape(M, WCout), w2_ref)
    z = acc2 * sbv[:, 2:3, :] + sbv[:, 3:4, :]

    # ---- residual path --------------------------------------------------------
    x_int = xpr[:, 1:H + 1, :].reshape(M, WCin)
    if expand_residual:
        ident = jnp.dot(x_int, we_ref[...], preferred_element_type=f32)
    else:
        ident = x_int.astype(f32)           # Cin == Cout, identity
    ident = ident.reshape(Btile, H, WCout)

    res = jnp.maximum(z + ident, 0.0)

    # Emit the chained lane-dense layout: row-padded bf16 with zeroed halo rows
    # so the next Block consumes this output with no XLA pad/transpose/cast.
    zout = jnp.zeros((Btile, 1, WCout), out_ref.dtype)
    out_ref[:, 0:1, :] = zout
    out_ref[:, H + 1:H + 2, :] = zout
    out_ref[:, 1:H + 1, :] = res.astype(out_ref.dtype)


# ----------------------------------------------------------------------------
# One-time parameter preparation (hoisted out of the per-step forward)
# ----------------------------------------------------------------------------
def _make_row_weights(w, W):
    """(3, 3, Cin, Cout) conv weight -> banded row-matmul weights (3, W*Cin, W*Cout).

    Wrow[ky][win*Cin + ci, wout*Cout + co] = w[ky, win - wout + 1, ci, co]
    when |win - wout| <= 1, else 0 (which also implements the left/right pad).
    """
    kh, kw, Cin, Cout = w.shape
    win = jnp.arange(W)[:, None]
    wout = jnp.arange(W)[None, :]
    kx = win - wout + 1                                       # (W, W)
    valid = ((kx >= 0) & (kx <= kw - 1)).astype(w.dtype)
    big = w[:, jnp.clip(kx, 0, kw - 1), :, :]                 # (3, W, W, Cin, Cout)
    big = big * valid[None, :, :, None, None]
    big = jnp.transpose(big, (0, 1, 3, 2, 4))                 # (3, W, Cin, W, Cout)
    return big.reshape(kh, W * Cin, W * Cout)


def _make_blockdiag(we, W):
    """(Cin, Cout) 1x1-conv weight -> block-diagonal (W*Cin, W*Cout) for lane-dense x."""
    Cin, Cout = we.shape
    eye = jnp.eye(W, dtype=we.dtype)
    big = eye[:, None, :, None] * we[None, :, None, :]        # (W, Cin, W, Cout)
    return big.reshape(W * Cin, W * Cout)


def prepare_block_params(params, W, expand_residual=True):
    """Build the kernel-ready weights ONCE (banded row weights + bf16 casts)."""
    Cin, Cout = params["w1"].shape[2], params["w1"].shape[3]
    if not expand_residual:
        assert Cin == Cout, "identity residual requires in_channels == out_channels"
    prep = {
        "W": W, "Cin": Cin, "Cout": Cout, "expand_residual": expand_residual,
        "w1row": _make_row_weights(params["w1"], W).astype(jnp.bfloat16),  # (3, W*Cin,  W*Cout)
        "w2row": _make_row_weights(params["w2"], W).astype(jnp.bfloat16),  # (3, W*Cout, W*Cout)
        "lin1_t": params["lin1_t"], "lin2_t": params["lin2_t"],
        "g1": params["g1"], "h1": params["h1"], "cb1": params["cb1"],
        "g2": params["g2"], "h2": params["h2"], "cb2": params["cb2"],
    }
    if expand_residual:
        we_fold = params["we"] * params["ge"][None, :]        # fold BN scale into the 1x1 conv
        prep["webd"] = _make_blockdiag(we_fold, W).astype(jnp.bfloat16)    # (W*Cin, W*Cout)
        prep["res_c"] = params["ecb"] * params["ge"] + params["he"]        # (Cout,)
    return prep


def _pick_btile(B, H, target_m=256):
    """Largest divisor of B with Btile*H <= target_m (fills the MXU M dim and
    amortizes ~0.35us/step grid overhead); back off if that leaves a length-1
    'parallel' grid so v7x's two TensorCores both get work."""
    best = 1
    for bt in range(1, B + 1):
        if B % bt == 0 and bt * H <= target_m:
            best = bt
    if best > 1 and B // best < 2:
        smaller = [bt for bt in range(1, best) if B % bt == 0 and B // bt >= 2]
        if smaller:
            best = max(smaller)
    return best


# ----------------------------------------------------------------------------
# Forward passes
# ----------------------------------------------------------------------------
def block_forward_lane(xpr, scale_bias, prep, *, target_m=256):
    """Chained-layout forward.

    xpr: (B, H+2, W*Cin) row-padded lane-dense bf16 (halo rows zero).
    Returns ((B, H+2, W*Cout) bf16 in the same layout, scale_bias) so
    successive Blocks chain with zero per-block XLA layout ops.
    """
    B, Hp2, WCin = xpr.shape
    H = Hp2 - 2
    W, Cout = prep["W"], prep["Cout"]
    WCout = W * Cout
    hi = jax.lax.Precision.HIGHEST

    # scale_bias_cn: two tiny bias-free Linears — plain XLA (a dedicated kernel
    # launch here would be pure overhead).
    sb4 = jnp.dot(jnp.dot(scale_bias, prep["lin1_t"], precision=hi),
                  prep["lin2_t"], precision=hi)                       # (B, 4*Cout)
    s1, b1, s2, b2 = jnp.split(sb4, 4, axis=1)                        # (B, Cout) each

    # Fold conv bias + FiLM + (inference) BN into one affine per stage.
    A1 = s1 * prep["g1"][None, :]
    C1 = (prep["cb1"][None, :] * s1 + b1) * prep["g1"][None, :] + prep["h1"][None, :]
    A2 = s2 * prep["g2"][None, :]
    C2 = (prep["cb2"][None, :] * s2 + b2) * prep["g2"][None, :] + prep["h2"][None, :]
    if prep["expand_residual"]:
        C2 = C2 + prep["res_c"][None, :]
    # Lane-tile so the in-kernel epilogue is one broadcast FMA over (H, W*Cout).
    sbv = jnp.stack([jnp.tile(A1, (1, W)), jnp.tile(C1, (1, W)),
                     jnp.tile(A2, (1, W)), jnp.tile(C2, (1, W))],
                    axis=1).astype(jnp.float32)                       # (B, 4, W*Cout)

    Btile = _pick_btile(B, H, target_m=target_m)

    inputs = [xpr, sbv, prep["w1row"], prep["w2row"]]
    in_specs = [
        pl.BlockSpec((Btile, H + 2, WCin), lambda b: (b, 0, 0)),
        pl.BlockSpec((Btile, 4, WCout), lambda b: (b, 0, 0)),
        # TODO(synk): at production channel counts mark these grid-invariant
        # weight blocks pipeline_mode=pl.Buffered(1) and size tiles for v7x's
        # 64 MiB VMEM (raise vmem_limit_bytes explicitly).
        pl.BlockSpec((3, WCin, WCout), lambda b: (0, 0, 0)),
        pl.BlockSpec((3, WCout, WCout), lambda b: (0, 0, 0)),
    ]
    if prep["expand_residual"]:
        inputs.append(prep["webd"])
        in_specs.append(pl.BlockSpec((WCin, WCout), lambda b: (0, 0)))

    flops = B * (2 * H * WCin * WCout * 3 + 2 * H * WCout * WCout * 3
                 + (2 * H * WCin * WCout if prep["expand_residual"] else 0))
    bytes_accessed = (xpr.size * 2 + B * (H + 2) * WCout * 2 + sbv.size * 4
                      + prep["w1row"].size * 2 + prep["w2row"].size * 2
                      + (prep["webd"].size * 2 if prep["expand_residual"] else 0))
    cost = pl.CostEstimate(flops=int(flops), transcendentals=0,
                           bytes_accessed=int(bytes_accessed))

    out = pl.pallas_call(
        functools.partial(_block_kernel, prep["expand_residual"], Btile, H),
        out_shape=jax.ShapeDtypeStruct((B, H + 2, WCout), jnp.bfloat16),
        grid_spec=pltpu.PrefetchScalarGridSpec(
            num_scalar_prefetch=0,
            grid=(B // Btile,),
            in_specs=in_specs,
            out_specs=pl.BlockSpec((Btile, H + 2, WCout), lambda b: (b, 0, 0)),
            scratch_shapes=[pltpu.VMEM((Btile, H + 2, WCout), jnp.bfloat16)],
        ),
        compiler_params=pltpu.CompilerParams(dimension_semantics=("parallel",)),
        cost_estimate=cost,
    )(*inputs)
    return out, scale_bias


def block_forward(x, scale_bias, prep):
    """NCHW-compatibility wrapper (layout ops only) around the lane-dense core.

    x: (B, Cin, H, W) NCHW (PyTorch layout); scale_bias: (B, lt_features).
    """
    B, Cin, H, W = x.shape
    assert W == prep["W"] and Cin == prep["Cin"]
    Cout = prep["Cout"]
    x_nhwc = jnp.transpose(x, (0, 2, 3, 1))                           # (B, H, W, Cin)
    xpr = jnp.pad(x_nhwc, ((0, 0), (1, 1), (0, 0), (0, 0)))
    xpr = xpr.reshape(B, H + 2, W * Cin).astype(jnp.bfloat16)
    out_ld, sb = block_forward_lane(xpr, scale_bias, prep)
    out = out_ld[:, 1:H + 1, :].astype(jnp.float32)
    out = jnp.transpose(out.reshape(B, H, W, Cout), (0, 3, 1, 2))     # back to NCHW
    return out, sb


# ----------------------------------------------------------------------------
# Deterministic parameter init (synthetic; matches module __init__ shapes)
# ----------------------------------------------------------------------------
def init_params(key, Cin, Cout, L, expand_residual=True):
    ks = jax.random.split(key, 20)
    eps = 1e-5

    def norm(k, shape, scale=0.1):
        return (scale * jax.random.normal(k, shape)).astype(jnp.float32)

    def bn_fold(kg, kb, km, kv):
        gamma = 1.0 + norm(kg, (Cout,))
        beta = norm(kb, (Cout,))
        mean = norm(km, (Cout,))
        var = 1.0 + jnp.abs(norm(kv, (Cout,)))
        g = gamma / jnp.sqrt(var + eps)
        h = beta - mean * g
        return g.astype(jnp.float32), h.astype(jnp.float32)

    p = {}
    p["w1"] = norm(ks[0], (3, 3, Cin, Cout))         # cn1 weight, (kh,kw,Cin,Cout)
    p["cb1"] = norm(ks[1], (Cout,))                  # cn1 bias
    p["w2"] = norm(ks[2], (3, 3, Cout, Cout))        # cn2 weight
    p["cb2"] = norm(ks[3], (Cout,))                  # cn2 bias
    p["g1"], p["h1"] = bn_fold(ks[4], ks[5], ks[6], ks[7])      # bn1 folded
    p["g2"], p["h2"] = bn_fold(ks[8], ks[9], ks[10], ks[11])    # bn2 folded
    if expand_residual:
        p["we"] = norm(ks[12], (Cin, Cout))          # 1x1 conv weight
        p["ecb"] = norm(ks[13], (Cout,))             # 1x1 conv bias
        p["ge"], p["he"] = bn_fold(ks[14], ks[15], ks[16], ks[17])
    else:
        assert Cin == Cout
        p["we"] = jnp.eye(Cin, dtype=jnp.float32)    # identity residual (reference only)
        p["ecb"] = jnp.zeros((Cout,), jnp.float32)
        p["ge"] = jnp.ones((Cout,), jnp.float32)
        p["he"] = jnp.zeros((Cout,), jnp.float32)
    p["lin1_t"] = norm(ks[18], (L, L), scale=0.2)           # Linear1 weight (pre-transposed)
    p["lin2_t"] = norm(ks[19], (L, 4 * Cout), scale=0.2)    # Linear2 weight (pre-transposed)
    return p


# ----------------------------------------------------------------------------
# Pure-JAX reference (f32, HIGHEST precision) for the sanity check
# ----------------------------------------------------------------------------
def reference_forward(x, scale_bias, params):
    hi = jax.lax.Precision.HIGHEST
    B, Cin, H, W = x.shape
    Cout = params["w1"].shape[3]
    sb4 = jnp.dot(jnp.dot(scale_bias, params["lin1_t"], precision=hi),
                  params["lin2_t"], precision=hi)
    s1 = sb4[:, 0:Cout][:, :, None, None]
    b1 = sb4[:, Cout:2 * Cout][:, :, None, None]
    s2 = sb4[:, 2 * Cout:3 * Cout][:, :, None, None]
    b2 = sb4[:, 3 * Cout:4 * Cout][:, :, None, None]

    def conv(z, w_hwio, bias):
        w_oihw = jnp.transpose(w_hwio, (3, 2, 0, 1))
        y = jax.lax.conv_general_dilated(
            z, w_oihw, (1, 1), ((1, 1), (1, 1)),
            dimension_numbers=("NCHW", "OIHW", "NCHW"), precision=hi)
        return y + bias[None, :, None, None]

    y = conv(x, params["w1"], params["cb1"]) * s1 + b1
    y = y * params["g1"][None, :, None, None] + params["h1"][None, :, None, None]
    y = jnp.maximum(y, 0.0)
    y = conv(y, params["w2"], params["cb2"]) * s2 + b2
    y = y * params["g2"][None, :, None, None] + params["h2"][None, :, None, None]
    ident = jnp.einsum("bchw,co->bohw", x, params["we"], precision=hi)
    ident = ident + params["ecb"][None, :, None, None]
    ident = ident * params["ge"][None, :, None, None] + params["he"][None, :, None, None]
    return jnp.maximum(y + ident, 0.0), scale_bias


# ----------------------------------------------------------------------------
if __name__ == "__main__":
    def run_case(Cin, Cout, expand_residual, key):
        B, L, H, W = 2, 32, 16, 16
        kx, ksb, kp = jax.random.split(key, 3)
        x = jax.random.normal(kx, (B, Cin, H, W), dtype=jnp.float32)
        scale_bias = jax.random.normal(ksb, (B, L), dtype=jnp.float32)
        params = init_params(kp, Cin, Cout, L, expand_residual=expand_residual)

        # One-time weight preparation (banded weights + bf16 casts), hoisted out
        # of the per-step forward.
        prep = prepare_block_params(params, W, expand_residual=expand_residual)

        out, sb_out = block_forward(x, scale_bias, prep)
        out = np.asarray(jax.block_until_ready(out))
        ref_out, _ = reference_forward(x, scale_bias, params)
        ref_out = np.asarray(jax.block_until_ready(ref_out))

        assert out.shape == (B, Cout, H, W)
        assert sb_out.shape == scale_bias.shape
        # Kernel uses bf16 MXU operands + bf16 chained output vs a f32/HIGHEST
        # reference: normalized max-error check (robust near the ReLU).
        max_err = float(np.max(np.abs(out - ref_out)))
        tol = 2e-2 * float(np.max(np.abs(ref_out))) + 2e-2
        assert max_err < tol, f"max_err={max_err:.4f} tol={tol:.4f}"

    k1, k2 = jax.random.split(jax.random.PRNGKey(0))
    run_case(Cin=4, Cout=8, expand_residual=True, key=k1)    # 1x1-conv residual path
    run_case(Cin=8, Cout=8, expand_residual=False, key=k2)   # identity residual (matmul skipped)
    print("KERNEL_OK")
</pallas_src>

<mosaic_0001>
module attributes {stable_mosaic.version = 11 : i64} {
  func.func @_block_kernel(%arg0: i32, %arg1: memref<1x18x64xbf16, #tpu.memory_space<vmem>>, %arg2: memref<1x4x128xf32, #tpu.memory_space<vmem>>, %arg3: memref<3x64x128xbf16, #tpu.memory_space<vmem>>, %arg4: memref<3x128x128xbf16, #tpu.memory_space<vmem>>, %arg5: memref<64x128xbf16, #tpu.memory_space<vmem>>, %arg6: memref<1x18x128xbf16, #tpu.memory_space<vmem>>, %arg7: memref<1x18x128xbf16, #tpu.memory_space<vmem>>) attributes {dimension_semantics = [#tpu.dimension_semantics<parallel>], iteration_bounds = array<i64: 2>, scalar_prefetch = 0 : i64, scratch_operands = 1 : i64, tpu.core_type = #tpu.core_type<tc>, window_params = [{transform_indices = @transform_0, window_bounds = array<i64: 1, 18, 64>}, {transform_indices = @transform_1, window_bounds = array<i64: 1, 4, 128>}, {pipeline_mode = #tpu.pipeline_mode<synchronous>, transform_indices = @transform_2, window_bounds = array<i64: 3, 64, 128>}, {pipeline_mode = #tpu.pipeline_mode<synchronous>, transform_indices = @transform_3, window_bounds = array<i64: 3, 128, 128>}, {pipeline_mode = #tpu.pipeline_mode<synchronous>, transform_indices = @transform_4, window_bounds = array<i64: 64, 128>}, {transform_indices = @transform_5, window_bounds = array<i64: 1, 18, 128>}]} {
    %c0 = arith.constant 0 : index
    %c0_0 = arith.constant 0 : index
    %c0_1 = arith.constant 0 : index
    %0 = vector.load %arg1[%c0, %c0_0, %c0_1] : memref<1x18x64xbf16, #tpu.memory_space<vmem>>, vector<1x18x64xbf16>
    %c0_2 = arith.constant 0 : index
    %c0_3 = arith.constant 0 : index
    %c0_4 = arith.constant 0 : index
    %1 = vector.load %arg2[%c0_2, %c0_3, %c0_4] : memref<1x4x128xf32, #tpu.memory_space<vmem>>, vector<1x4x128xf32>
    %2 = vector.extract_strided_slice %0 {offsets = [0, 0, 0], sizes = [1, 16, 64], strides = [1, 1, 1]} : vector<1x18x64xbf16> to vector<1x16x64xbf16>
    %3 = vector.shape_cast %2 : vector<1x16x64xbf16> to vector<16x64xbf16>
    %c0_5 = arith.constant 0 : index
    %c0_6 = arith.constant 0 : index
    %c0_7 = arith.constant 0 : index
    %4 = vector.load %arg3[%c0_5, %c0_6, %c0_7] : memref<3x64x128xbf16, #tpu.memory_space<vmem>>, vector<1x64x128xbf16>
    %5 = vector.shape_cast %4 : vector<1x64x128xbf16> to vector<64x128xbf16>
    %cst = arith.constant dense<0.000000e+00> : vector<16x128xf32>
    %6 = tpu.matmul %3, %5, %cst {dimension_numbers = #tpu.dot_dimension_numbers<[1], [0], [0], [1], [0, 0, 1, 1], [], []>} : vector<16x64xbf16>, vector<64x128xbf16>, vector<16x128xf32> -> vector<16x128xf32>
    %7 = vector.extract_strided_slice %0 {offsets = [0, 1, 0], sizes = [1, 16, 64], strides = [1, 1, 1]} : vector<1x18x64xbf16> to vector<1x16x64xbf16>
    %8 = vector.shape_cast %7 : vector<1x16x64xbf16> to vector<16x64xbf16>
    %c1 = arith.constant 1 : index
    %c0_8 = arith.constant 0 : index
    %c0_9 = arith.constant 0 : index
    %9 = vector.load %arg3[%c1, %c0_8, %c0_9] : memref<3x64x128xbf16, #tpu.memory_space<vmem>>, vector<1x64x128xbf16>
    %10 = vector.shape_cast %9 : vector<1x64x128xbf16> to vector<64x128xbf16>
    %cst_10 = arith.constant dense<0.000000e+00> : vector<16x128xf32>
    %11 = tpu.matmul %8, %10, %cst_10 {dimension_numbers = #tpu.dot_dimension_numbers<[1], [0], [0], [1], [0, 0, 1, 1], [], []>} : vector<16x64xbf16>, vector<64x128xbf16>, vector<16x128xf32> -> vector<16x128xf32>
    %12 = arith.addf %6, %11 : vector<16x128xf32>
    %13 = vector.extract_strided_slice %0 {offsets = [0, 2, 0], sizes = [1, 16, 64], strides = [1, 1, 1]} : vector<1x18x64xbf16> to vector<1x16x64xbf16>
    %14 = vector.shape_cast %13 : vector<1x16x64xbf16> to vector<16x64xbf16>
    %c2 = arith.constant 2 : index
    %c0_11 = arith.constant 0 : index
    %c0_12 = arith.constant 0 : index
    %15 = vector.load %arg3[%c2, %c0_11, %c0_12] : memref<3x64x128xbf16, #tpu.memory_space<vmem>>, vector<1x64x128xbf16>
    %16 = vector.shape_cast %15 : vector<1x64x128xbf16> to vector<64x128xbf16>
    %cst_13 = arith.constant dense<0.000000e+00> : vector<16x128xf32>
    %17 = tpu.matmul %14, %16, %cst_13 {dimension_numbers = #tpu.dot_dimension_numbers<[1], [0], [0], [1], [0, 0, 1, 1], [], []>} : vector<16x64xbf16>, vector<64x128xbf16>, vector<16x128xf32> -> vector<16x128xf32>
    %18 = arith.addf %12, %17 : vector<16x128xf32>
    %19 = vector.shape_cast %18 : vector<16x128xf32> to vector<1x16x128xf32>
    %20 = vector.extract_strided_slice %1 {offsets = [0, 0, 0], sizes = [1, 1, 128], strides = [1, 1, 1]} : vector<1x4x128xf32> to vector<1x1x128xf32>
    %21 = vector.broadcast %20 : vector<1x1x128xf32> to vector<1x16x128xf32>
    %22 = arith.mulf %19, %21 : vector<1x16x128xf32>
    %23 = vector.extract_strided_slice %1 {offsets = [0, 1, 0], sizes = [1, 1, 128], strides = [1, 1, 1]} : vector<1x4x128xf32> to vector<1x1x128xf32>
    %24 = vector.broadcast %23 : vector<1x1x128xf32> to vector<1x16x128xf32>
    %25 = arith.addf %22, %24 : vector<1x16x128xf32>
    %cst_14 = arith.constant 0.000000e+00 : f32
    %26 = vector.broadcast %cst_14 : f32 to vector<1x16x128xf32>
    %27 = arith.maximumf %25, %26 : vector<1x16x128xf32>
    %cst_15 = arith.constant 0.000000e+00 : bf16
    %28 = vector.broadcast %cst_15 : bf16 to vector<1x1x128xbf16>
    %c0_16 = arith.constant 0 : index
    %c0_17 = arith.constant 0 : index
    %c0_18 = arith.constant 0 : index
    %29 = vector.load %arg7[%c0_16, %c0_17, %c0_18] : memref<1x18x128xbf16, #tpu.memory_space<vmem>>, vector<1x1x128xbf16>
    tpu.vector_store %arg7[%c0_16, %c0_17, %c0_18], %28 {strides = array<i32>} : memref<1x18x128xbf16, #tpu.memory_space<vmem>>, vector<1x1x128xbf16>,
    %c0_19 = arith.constant 0 : index
    %c17 = arith.constant 17 : index
    %c0_20 = arith.constant 0 : index
    %30 = vector.load %arg7[%c0_19, %c17, %c0_20] : memref<1x18x128xbf16, #tpu.memory_space<vmem>>, vector<1x1x128xbf16>
    tpu.vector_store %arg7[%c0_19, %c17, %c0_20], %28 {strides = array<i32>} : memref<1x18x128xbf16, #tpu.memory_space<vmem>>, vector<1x1x128xbf16>,
    %31 = arith.truncf %27 : vector<1x16x128xf32> to vector<1x16x128xbf16>
    %c0_21 = arith.constant 0 : index
    %c1_22 = arith.constant 1 : index
    %c0_23 = arith.constant 0 : index
    %32 = vector.load %arg7[%c0_21, %c1_22, %c0_23] : memref<1x18x128xbf16, #tpu.memory_space<vmem>>, vector<1x16x128xbf16>
    tpu.vector_store %arg7[%c0_21, %c1_22, %c0_23], %31 {strides = array<i32>} : memref<1x18x128xbf16, #tpu.memory_space<vmem>>, vector<1x16x128xbf16>,
    %c0_24 = arith.constant 0 : index
    %c0_25 = arith.constant 0 : index
    %c0_26 = arith.constant 0 : index
    %33 = vector.load %arg7[%c0_24, %c0_25, %c0_26] : memref<1x18x128xbf16, #tpu.memory_space<vmem>>, vector<1x18x128xbf16>
    %34 = vector.extract_strided_slice %33 {offsets = [0, 0, 0], sizes = [1, 16, 128], strides = [1, 1, 1]} : vector<1x18x128xbf16> to vector<1x16x128xbf16>
    %35 = vector.shape_cast %34 : vector<1x16x128xbf16> to vector<16x128xbf16>
    %c0_27 = arith.constant 0 : index
    %c0_28 = arith.constant 0 : index
    %c0_29 = arith.constant 0 : index
    %36 = vector.load %arg4[%c0_27, %c0_28, %c0_29] : memref<3x128x128xbf16, #tpu.memory_space<vmem>>, vector<1x128x128xbf16>
    %37 = vector.shape_cast %36 : vector<1x128x128xbf16> to vector<128x128xbf16>
    %cst_30 = arith.constant dense<0.000000e+00> : vector<16x128xf32>
    %38 = tpu.matmul %35, %37, %cst_30 {dimension_numbers = #tpu.dot_dimension_numbers<[1], [0], [0], [1], [0, 0, 1, 1], [], []>} : vector<16x128xbf16>, vector<128x128xbf16>, vector<16x128xf32> -> vector<16x128xf32>
    %39 = vector.extract_strided_slice %33 {offsets = [0, 1, 0], sizes = [1, 16, 128], strides = [1, 1, 1]} : vector<1x18x128xbf16> to vector<1x16x128xbf16>
    %40 = vector.shape_cast %39 : vector<1x16x128xbf16> to vector<16x128xbf16>
    %c1_31 = arith.constant 1 : index
    %c0_32 = arith.constant 0 : index
    %c0_33 = arith.constant 0 : index
    %41 = vector.load %arg4[%c1_31, %c0_32, %c0_33] : memref<3x128x128xbf16, #tpu.memory_space<vmem>>, vector<1x128x128xbf16>
    %42 = vector.shape_cast %41 : vector<1x128x128xbf16> to vector<128x128xbf16>
    %cst_34 = arith.constant dense<0.000000e+00> : vector<16x128xf32>
    %43 = tpu.matmul %40, %42, %cst_34 {dimension_numbers = #tpu.dot_dimension_numbers<[1], [0], [0], [1], [0, 0, 1, 1], [], []>} : vector<16x128xbf16>, vector<128x128xbf16>, vector<16x128xf32> -> vector<16x128xf32>
    %44 = arith.addf %38, %43 : vector<16x128xf32>
    %45 = vector.extract_strided_slice %33 {offsets = [0, 2, 0], sizes = [1, 16, 128], strides = [1, 1, 1]} : vector<1x18x128xbf16> to vector<1x16x128xbf16>
    %46 = vector.shape_cast %45 : vector<1x16x128xbf16> to vector<16x128xbf16>
    %c2_35 = arith.constant 2 : index
    %c0_36 = arith.constant 0 : index
    %c0_37 = arith.constant 0 : index
    %47 = vector.load %arg4[%c2_35, %c0_36, %c0_37] : memref<3x128x128xbf16, #tpu.memory_space<vmem>>, vector<1x128x128xbf16>
    %48 = vector.shape_cast %47 : vector<1x128x128xbf16> to vector<128x128xbf16>
    %cst_38 = arith.constant dense<0.000000e+00> : vector<16x128xf32>
    %49 = tpu.matmul %46, %48, %cst_38 {dimension_numbers = #tpu.dot_dimension_numbers<[1], [0], [0], [1], [0, 0, 1, 1], [], []>} : vector<16x128xbf16>, vector<128x128xbf16>, vector<16x128xf32> -> vector<16x128xf32>
    %50 = arith.addf %44, %49 : vector<16x128xf32>
    %51 = vector.shape_cast %50 : vector<16x128xf32> to vector<1x16x128xf32>
    %52 = vector.extract_strided_slice %1 {offsets = [0, 2, 0], sizes = [1, 1, 128], strides = [1, 1, 1]} : vector<1x4x128xf32> to vector<1x1x128xf32>
    %53 = vector.broadcast %52 : vector<1x1x128xf32> to vector<1x16x128xf32>
    %54 = arith.mulf %51, %53 : vector<1x16x128xf32>
    %55 = vector.extract_strided_slice %1 {offsets = [0, 3, 0], sizes = [1, 1, 128], strides = [1, 1, 1]} : vector<1x4x128xf32> to vector<1x1x128xf32>
    %56 = vector.broadcast %55 : vector<1x1x128xf32> to vector<1x16x128xf32>
    %57 = arith.addf %54, %56 : vector<1x16x128xf32>
    %58 = vector.extract_strided_slice %0 {offsets = [0, 1, 0], sizes = [1, 16, 64], strides = [1, 1, 1]} : vector<1x18x64xbf16> to vector<1x16x64xbf16>
    %59 = vector.shape_cast %58 : vector<1x16x64xbf16> to vector<16x64xbf16>
    %c0_39 = arith.constant 0 : index
    %c0_40 = arith.constant 0 : index
    %60 = vector.load %arg5[%c0_39, %c0_40] : memref<64x128xbf16, #tpu.memory_space<vmem>>, vector<64x128xbf16>
    %cst_41 = arith.constant dense<0.000000e+00> : vector<16x128xf32>
    %61 = tpu.matmul %59, %60, %cst_41 {dimension_numbers = #tpu.dot_dimension_numbers<[1], [0], [0], [1], [0, 0, 1, 1], [], []>} : vector<16x64xbf16>, vector<64x128xbf16>, vector<16x128xf32> -> vector<16x128xf32>
    %62 = vector.shape_cast %61 : vector<16x128xf32> to vector<1x16x128xf32>
    %63 = arith.addf %57, %62 : vector<1x16x128xf32>
    %cst_42 = arith.constant 0.000000e+00 : f32
    %64 = vector.broadcast %cst_42 : f32 to vector<1x16x128xf32>
    %65 = arith.maximumf %63, %64 : vector<1x16x128xf32>
    %cst_43 = arith.constant 0.000000e+00 : bf16
    %66 = vector.broadcast %cst_43 : bf16 to vector<1x1x128xbf16>
    %c0_44 = arith.constant 0 : index
    %c0_45 = arith.constant 0 : index
    %c0_46 = arith.constant 0 : index
    %67 = vector.load %arg6[%c0_44, %c0_45, %c0_46] : memref<1x18x128xbf16, #tpu.memory_space<vmem>>, vector<1x1x128xbf16>
    tpu.vector_store %arg6[%c0_44, %c0_45, %c0_46], %66 {strides = array<i32>} : memref<1x18x128xbf16, #tpu.memory_space<vmem>>, vector<1x1x128xbf16>,
    %c0_47 = arith.constant 0 : index
    %c17_48 = arith.constant 17 : index
    %c0_49 = arith.constant 0 : index
    %68 = vector.load %arg6[%c0_47, %c17_48, %c0_49] : memref<1x18x128xbf16, #tpu.memory_space<vmem>>, vector<1x1x128xbf16>
    tpu.vector_store %arg6[%c0_47, %c17_48, %c0_49], %66 {strides = array<i32>} : memref<1x18x128xbf16, #tpu.memory_space<vmem>>, vector<1x1x128xbf16>,
    %69 = arith.truncf %65 : vector<1x16x128xf32> to vector<1x16x128xbf16>
    %c0_50 = arith.constant 0 : index
    %c1_51 = arith.constant 1 : index
    %c0_52 = arith.constant 0 : index
    %70 = vector.load %arg6[%c0_50, %c1_51, %c0_52] : memref<1x18x128xbf16, #tpu.memory_space<vmem>>, vector<1x16x128xbf16>
    tpu.vector_store %arg6[%c0_50, %c1_51, %c0_52], %69 {strides = array<i32>} : memref<1x18x128xbf16, #tpu.memory_space<vmem>>, vector<1x16x128xbf16>,
    return
  }
  func.func @transform_0(%arg0: i32) -> (i32, i32, i32) {
    %c0_i32 = arith.constant 0 : i32
    %c0_i32_0 = arith.constant 0 : i32
    %c0_i32_1 = arith.constant 0 : i32
    return %arg0, %c0_i32, %c0_i32_0 : i32, i32, i32
  }
  func.func @transform_1(%arg0: i32) -> (i32, i32, i32) {
    %c0_i32 = arith.constant 0 : i32
    %c0_i32_0 = arith.constant 0 : i32
    %c0_i32_1 = arith.constant 0 : i32
    return %arg0, %c0_i32, %c0_i32_0 : i32, i32, i32
  }
  func.func @transform_2(%arg0: i32) -> (i32, i32, i32) {
    %c0_i32 = arith.constant 0 : i32
    %c0_i32_0 = arith.constant 0 : i32
    %c0_i32_1 = arith.constant 0 : i32
    %c0_i32_2 = arith.constant 0 : i32
    return %c0_i32, %c0_i32_0, %c0_i32_1 : i32, i32, i32
  }
  func.func @transform_3(%arg0: i32) -> (i32, i32, i32) {
    %c0_i32 = arith.constant 0 : i32
    %c0_i32_0 = arith.constant 0 : i32
    %c0_i32_1 = arith.constant 0 : i32
    %c0_i32_2 = arith.constant 0 : i32
    return %c0_i32, %c0_i32_0, %c0_i32_1 : i32, i32, i32
  }
  func.func @transform_4(%arg0: i32) -> (i32, i32) {
    %c0_i32 = arith.constant 0 : i32
    %c0_i32_0 = arith.constant 0 : i32
    %c0_i32_1 = arith.constant 0 : i32
    return %c0_i32, %c0_i32_0 : i32, i32
  }
  func.func @transform_5(%arg0: i32) -> (i32, i32, i32) {
    %c0_i32 = arith.constant 0 : i32
    %c0_i32_0 = arith.constant 0 : i32
    %c0_i32_1 = arith.constant 0 : i32
    return %arg0, %c0_i32, %c0_i32_0 : i32, i32, i32
  }
}

</mosaic_0001>

<llo_original>
// kernel: tpu_custom_call.1
$region0: #{tpu_custom_call.1}
  #allocation0 [shape = 'u32[]', space=smem, size = 0x4, offset = 0x4, fixed_abs, tag = 'smem constant byte address 0x4 - core index']
  #allocation1 [shape = 'u32[72,128]{1,0:T(1,128)}', space=vmem, size = 0x9000, scoped, tag = 'internal scratch']
  #allocation2 [shape = 'bf16[1,18,128]{2,1,0:T(8,128)(2,1)}', space=vmem, size = 0x1800, scoped, tag = 'scratch operand']
  %s0 = inlined_call_operand.vmem [shape: bf16[2,18,64], index: 0, kind: input, shape index: {}]
  %s1 = inlined_call_operand.vmem [shape: f32[2,4,128], index: 1, kind: input, shape index: {}]
  %s2 = inlined_call_operand.hbm [shape: bf16[3,64,128], index: 2, kind: input, shape index: {}]
  %s3 = inlined_call_operand.hbm [shape: bf16[3,128,128], index: 3, kind: input, shape index: {}]
  %s4 = inlined_call_operand.vmem [shape: bf16[64,128], index: 4, kind: input, shape index: {}]
  %s5 = inlined_call_operand.vmem [shape: bf16[2,18,128], index: 5, kind: output, shape index: {}]
  %s6 = sld [smem:[#allocation0]]
  $region61: #{tpu_custom_call.1} parent=0
    _
  %s8 = ssub.s32 1, %s6
  %s9 = scalar_select 0, %s8, %s6
  $region1: #{tpu_custom_call.1} parent=0
    #allocation3 [shape = 'u8[49152]{0}', space=vmem, size = 0xc000, scoped, tag = 'input window, operand 2, single buffered']
    #allocation4 [shape = 's32[2]{0}', space=sflag, size = 0x8, scoped, tag = 'scoped memory for tpu_custom_call.1']
    #allocation5 [shape = 'u8[98304]{0}', space=vmem, size = 0x18000, scoped, tag = 'input window, operand 3, single buffered']
    #allocation6 [shape = 's32[1]{0}', space=sflag, size = 0x4, scoped, tag = 'scoped memory for tpu_custom_call.1']
    %10 = vsyncpa [#allocation4], 0
    %11 = vsyncpa [#allocation6], 0
    loop: start=0, step=1, limit=4
    $region2: #{tpu_custom_call.1} parent=1 // loop_pre_header
      _
    $region3: #{tpu_custom_call.1} parent=1 // loop_header
      %s13 = sphi 0, %s17
      %p14 = scmp.ge.s32.totalorder %s13, 4
      %s23 = sphi 0, %s25
      %s26 = sphi 0, %s23
      %s27 = sphi 0, %s26
      %s43 = sphi 0, %s27
      %s49 = sphi 0, %s51
      %s52 = sphi 0, %s49
      %s53 = sphi 0, %s52
      %s69 = sphi 0, %s53
      %s73 = sphi 0, %s73
      %s75 = sphi 0, %s73
      %s76 = sphi 0, %s75
      %s90 = sphi 0, %s76
      %s94 = sphi 0, %s94
      %s96 = sphi 0, %s94
      %s97 = sphi 0, %s96
      %s111 = sphi 0, %s97
      %s115 = sphi 0, %s115
      %s117 = sphi 0, %s115
      %s118 = sphi 0, %s117
      %s132 = sphi 0, %s118
      %s138 = sphi 0, %s140
      %s141 = sphi 0, %s138
      %s142 = sphi 0, %s141
      %s158 = sphi 0, %s142
    $region4: #{tpu_custom_call.1} parent=1 // loop_header_branch
      %16 = sbr.rel (%p14) target = $region8
    $region5: #{tpu_custom_call.1} parent=1 // loop_body
      %s18 = ssub.s32 %s13, 1
      %s19 = ssub.s32 %s13, 2
      %s20 = sadd.s32 %s13, 1
      %s21 = ssub.s32 %s13, %s20
      %p22 = scmp.eq.s32.totalorder %s21, 0
      %s24 = sadd.s32 %s23, 1
      %s25 = scalar_select %p22, %s23, %s24
      %p28 = pneg %p22
      %p29 = scmp.eq.s32.totalorder %s13, 1
      %p30 = por %p28, %p29
      %p31 = scmp.ne.s32.totalorder %s23, %s26
      %p32 = scmp.eq.s32.totalorder %s13, 0
      %p33 = por %p31, %p32
      %p34 = scmp.ne.s32.totalorder %s23, %s26
      %p35 = scmp.eq.s32.totalorder %s18, 1
      %p36 = por %p34, %p35
      %p37 = scmp.ne.s32.totalorder %s26, %s27
      %p38 = scmp.eq.s32.totalorder %s18, 0
      %p39 = por %p37, %p38
      %p40 = scmp.ne.s32.totalorder %s26, %s27
      %p41 = scmp.eq.s32.totalorder %s19, 1
      %p42 = por %p40, %p41
      %p44 = scmp.ne.s32.totalorder %s27, %s43
      %p45 = scmp.eq.s32.totalorder %s19, 0
      %p46 = por %p44, %p45
      %s47 = ssub.s32 %s13, %s20
      %p48 = scmp.eq.s32.totalorder %s47, 0
      %s50 = sadd.s32 %s49, 1
      %s51 = scalar_select %p48, %s49, %s50
      %p54 = pneg %p48
      %p55 = scmp.eq.s32.totalorder %s13, 1
      %p56 = por %p54, %p55
      %p57 = scmp.ne.s32.totalorder %s49, %s52
      %p58 = scmp.eq.s32.totalorder %s13, 0
      %p59 = por %p57, %p58
      %p60 = scmp.ne.s32.totalorder %s49, %s52
      %p61 = scmp.eq.s32.totalorder %s18, 1
      %p62 = por %p60, %p61
      %p63 = scmp.ne.s32.totalorder %s52, %s53
      %p64 = scmp.eq.s32.totalorder %s18, 0
      %p65 = por %p63, %p64
      %p66 = scmp.ne.s32.totalorder %s52, %s53
      %p67 = scmp.eq.s32.totalorder %s19, 1
      %p68 = por %p66, %p67
      %p70 = scmp.ne.s32.totalorder %s53, %s69
      %p71 = scmp.eq.s32.totalorder %s19, 0
      %p72 = por %p70, %p71
      %s74 = sadd.s32 %s73, 1
      %p77 = scmp.eq.s32.totalorder %s13, 1
      %p78 = scmp.ne.s32.totalorder %s73, %s75
      %p79 = scmp.eq.s32.totalorder %s13, 0
      %p80 = por %p78, %p79
      %p81 = scmp.ne.s32.totalorder %s73, %s75
      %p82 = scmp.eq.s32.totalorder %s18, 1
      %p83 = por %p81, %p82
      %p84 = scmp.ne.s32.totalorder %s75, %s76
      %p85 = scmp.eq.s32.totalorder %s18, 0
      %p86 = por %p84, %p85
      %p87 = scmp.ne.s32.totalorder %s75, %s76
      %p88 = scmp.eq.s32.totalorder %s19, 1
      %p89 = por %p87, %p88
      %p91 = scmp.ne.s32.totalorder %s76, %s90
      %p92 = scmp.eq.s32.totalorder %s19, 0
      %p93 = por %p91, %p92
      %s95 = sadd.s32 %s94, 1
      %p98 = scmp.eq.s32.totalorder %s13, 1
      %p99 = scmp.ne.s32.totalorder %s94, %s96
      %p100 = scmp.eq.s32.totalorder %s13, 0
      %p101 = por %p99, %p100
      %p102 = scmp.ne.s32.totalorder %s94, %s96
      %p103 = scmp.eq.s32.totalorder %s18, 1
      %p104 = por %p102, %p103
      %p105 = scmp.ne.s32.totalorder %s96, %s97
      %p106 = scmp.eq.s32.totalorder %s18, 0
      %p107 = por %p105, %p106
      %p108 = scmp.ne.s32.totalorder %s96, %s97
      %p109 = scmp.eq.s32.totalorder %s19, 1
      %p110 = por %p108, %p109
      %p112 = scmp.ne.s32.totalorder %s97, %s111
      %p113 = scmp.eq.s32.totalorder %s19, 0
      %p114 = por %p112, %p113
      %s116 = sadd.s32 %s115, 1
      %p119 = scmp.eq.s32.totalorder %s13, 1
      %p120 = scmp.ne.s32.totalorder %s115, %s117
      %p121 = scmp.eq.s32.totalorder %s13, 0
      %p122 = por %p120, %p121
      %p123 = scmp.ne.s32.totalorder %s115, %s117
      %p124 = scmp.eq.s32.totalorder %s18, 1
      %p125 = por %p123, %p124
      %p126 = scmp.ne.s32.totalorder %s117, %s118
      %p127 = scmp.eq.s32.totalorder %s18, 0
      %p128 = por %p126, %p127
      %p129 = scmp.ne.s32.totalorder %s117, %s118
      %p130 = scmp.eq.s32.totalorder %s19, 1
      %p131 = por %p129, %p130
      %p133 = scmp.ne.s32.totalorder %s118, %s132
      %p134 = scmp.eq.s32.totalorder %s19, 0
      %p135 = por %p133, %p134
      %s136 = ssub.s32 %s13, %s20
      %p137 = scmp.eq.s32.totalorder %s136, 0
      %s139 = sadd.s32 %s138, 1
      %s140 = scalar_select %p137, %s138, %s139
      %p143 = pneg %p137
      %p144 = scmp.eq.s32.totalorder %s13, 1
      %p145 = por %p143, %p144
      %p146 = scmp.ne.s32.totalorder %s138, %s141
      %p147 = scmp.eq.s32.totalorder %s13, 0
      %p148 = por %p146, %p147
      %p149 = scmp.ne.s32.totalorder %s138, %s141
      %p150 = scmp.eq.s32.totalorder %s18, 1
      %p151 = por %p149, %p150
      %p152 = scmp.ne.s32.totalorder %s141, %s142
      %p153 = scmp.eq.s32.totalorder %s18, 0
      %p154 = por %p152, %p153
      %p155 = scmp.ne.s32.totalorder %s141, %s142
      %p156 = scmp.eq.s32.totalorder %s19, 1
      %p157 = por %p155, %p156
      %p159 = scmp.ne.s32.totalorder %s142, %s158
      %p160 = scmp.eq.s32.totalorder %s19, 0
      %p161 = por %p159, %p160
      %p162 = scmp.le.s32.totalorder 1, %s13
      %p163 = scmp.lt.s32.totalorder %s13, 3
      %p164 = pnand %p162, %p163
      %p165 = pneg %p164
      // Predicated region
      $region9: #{tpu_custom_call.1} parent=5 // pred_check
        _
      $region10: #{tpu_custom_call.1} parent=5 // pred_check_branch
        %167 = sbr.rel (%p164) target = $region12
      $region11: #{tpu_custom_call.1} parent=5 // pred_region
        %s168 = ssub.s32 %s13, 1
        // Predicated region
        $region13: #{tpu_custom_call.1} parent=11 // pred_check
          %p169 = pneg %p86
        $region14: #{tpu_custom_call.1} parent=11 // pred_check_branch
          %171 = sbr.rel (%p169) target = $region16
        $region15: #{tpu_custom_call.1} parent=11 // pred_region
          %173 = vsyncadd [#allocation4], 0
          %s174 = sshll.u32 %s2, 4
          %s175 = int_to_ptr.hbm [resolvable:$true] %s174
          %s176 = sshll.u32 [#allocation3], 4
          %s177 = int_to_ptr.vmem [resolvable:$true] %s176
          %182 = dma.hbm_to_vmem [thread:$0]  %s175, 1536, %s177, [#allocation4], 64, 64, 4
        $region16: #{tpu_custom_call.1} parent=11 // pred_fallthru
          _
        // Predicated region
        $region17: #{tpu_custom_call.1} parent=11 // pred_check
          %p183 = pneg %p107
        $region18: #{tpu_custom_call.1} parent=11 // pred_check_branch
          %185 = sbr.rel (%p183) target = $region20
        $region19: #{tpu_custom_call.1} parent=11 // pred_region
          %187 = vsyncadd [#allocation6], 0
          %s188 = sshll.u32 %s3, 4
          %s189 = int_to_ptr.hbm [resolvable:$true] %s188
          %s190 = sshll.u32 [#allocation5], 4
          %s191 = int_to_ptr.vmem [resolvable:$true] %s190
          %196 = dma.hbm_to_vmem [thread:$0]  %s189, 3072, %s191, [#allocation6], 64, 64, 4
        $region20: #{tpu_custom_call.1} parent=11 // pred_fallthru
          _
        // Predicated region
        $region21: #{tpu_custom_call.1} parent=11 // pred_check
          %p197 = pneg %p128
        $region22: #{tpu_custom_call.1} parent=11 // pred_check_branch
          %199 = sbr.rel (%p197) target = $region24
        $region23: #{tpu_custom_call.1} parent=11 // pred_region
          _
        $region24: #{tpu_custom_call.1} parent=11 // pred_fallthru
          _
      $region12: #{tpu_custom_call.1} parent=5 // pred_fallthru
        _
      %p200 = scmp.lt.s32.totalorder %s13, 2
      // Predicated region
      $region25: #{tpu_custom_call.1} parent=5 // pred_check
        %p201 = pneg %p200
      $region26: #{tpu_custom_call.1} parent=5 // pred_check_branch
        %203 = sbr.rel (%p201) target = $region28
      $region27: #{tpu_custom_call.1} parent=5 // pred_region
        // Predicated region
        $region29: #{tpu_custom_call.1} parent=27 // pred_check
          %p204 = pneg %p33
        $region30: #{tpu_custom_call.1} parent=27 // pred_check_branch
          %206 = sbr.rel (%p204) target = $region32
        $region31: #{tpu_custom_call.1} parent=27 // pred_region
          %p207 = scmp.lt.s32.totalorder %s13, 1
          %s208 = scalar_select %p207, %s13, 1
          %s209 = smul.addr %s208, 3
          %s210 = smul.addr %s209, 4
          %s211 = scalar_lea.vmem %s0, %s210
        $region32: #{tpu_custom_call.1} parent=27 // pred_fallthru
          _
        // Predicated region
        $region33: #{tpu_custom_call.1} parent=27 // pred_check
          %p212 = pneg %p59
        $region34: #{tpu_custom_call.1} parent=27 // pred_check_branch
          %214 = sbr.rel (%p212) target = $region36
        $region35: #{tpu_custom_call.1} parent=27 // pred_region
          %p215 = scmp.lt.s32.totalorder %s13, 1
          %s216 = scalar_select %p215, %s13, 1
          %s217 = smul.addr %s216, 4
          %s218 = scalar_lea.vmem %s1, %s217
        $region36: #{tpu_custom_call.1} parent=27 // pred_fallthru
          _
      $region28: #{tpu_custom_call.1} parent=5 // pred_fallthru
        _
      %p219 = scmp.le.s32.totalorder 1, %s13
      %p220 = scmp.lt.s32.totalorder %s13, 3
      %p221 = pnand %p219, %p220
      %p222 = pneg %p221
      // Predicated region
      $region37: #{tpu_custom_call.1} parent=5 // pred_check
        _
      $region38: #{tpu_custom_call.1} parent=5 // pred_check_branch
        %224 = sbr.rel (%p221) target = $region40
      $region39: #{tpu_custom_call.1} parent=5 // pred_region
        %s225 = ssub.s32 %s13, 1
        // Predicated region
        $region41: #{tpu_custom_call.1} parent=39 // pred_check
          %p226 = pneg %p86
        $region42: #{tpu_custom_call.1} parent=39 // pred_check_branch
          %228 = sbr.rel (%p226) target = $region44
        $region43: #{tpu_custom_call.1} parent=39 // pred_region
          %230 = dma.done [#allocation4], 1536
        $region44: #{tpu_custom_call.1} parent=39 // pred_fallthru
          _
        // Predicated region
        $region45: #{tpu_custom_call.1} parent=39 // pred_check
          %p231 = pneg %p107
        $region46: #{tpu_custom_call.1} parent=39 // pred_check_branch
          %233 = sbr.rel (%p231) target = $region48
        $region47: #{tpu_custom_call.1} parent=39 // pred_region
          %235 = dma.done [#allocation6], 3072
        $region48: #{tpu_custom_call.1} parent=39 // pred_fallthru
          _
        %p236 = scmp.lt.s32.totalorder %s18, 1
        %s237 = scalar_select %p236, %s18, 1
        %s238 = smul.addr %s237, 3
        %s239 = smul.addr %s238, 4
        %s240 = scalar_lea.vmem %s0, %s239
        %p241 = pneg %p39
        %p242 = pneg %p36
        %p243 = scmp.lt.s32.totalorder %s18, 1
        %s244 = scalar_select %p243, %s18, 1
        %s245 = smul.addr %s244, 4
        %s246 = scalar_lea.vmem %s1, %s245
        %p247 = pneg %p65
        %p248 = pneg %p62
        %p249 = pneg %p86
        %p250 = pneg %p83
        %p251 = pneg %p107
        %p252 = pneg %p104
        %p253 = pneg %p128
        %p254 = pneg %p125
        %p255 = pneg %p154
        %p256 = pneg %p151
        %p257 = scmp.lt.s32.totalorder %s18, 1
        %s258 = scalar_select %p257, %s18, 1
        %s259 = smul.addr %s258, 3
        %s260 = smul.addr %s259, 4
        %s261 = scalar_lea.vmem %s5, %s260
        %p262 = scmp.lt.s32.totalorder %s18, 1
        %s263 = scalar_select %p262, %s18, 1
        %s264 = smul.addr %s263, 3
        %s265 = smul.addr %s264, 4
        %s266 = scalar_lea.vmem %s0, %s265
        %p267 = scmp.lt.s32.totalorder %s18, 1
        %s268 = scalar_select %p267, %s18, 1
        %s269 = smul.addr %s268, 4
        %s270 = scalar_lea.vmem %s1, %s269
        %p271 = scmp.lt.s32.totalorder %s18, 1
        %s272 = scalar_select %p271, %s18, 1
        %s273 = smul.addr %s272, 3
        %s274 = smul.addr %s273, 4
        %s275 = scalar_lea.vmem %s5, %s274
        %v277 = vld [vmem:[%s266] sm:$0xf]
        %v278 = vld [vmem:[%s266 + $0x4] sm:$0xf]
        %v279 = vld [vmem:[%s266 + $0x8] sm:$0x1]
        %v280 = vld [vmem:[%s270] sm:$0xf]
        %v281 = vld [vmem:[#allocation3] sm:$0xf]
        %v282 = vld [vmem:[#allocation3 + $0x4] sm:$0xf]
        %v283 = vld [vmem:[#allocation3 + $0x8] sm:$0xf]
        %v284 = vld [vmem:[#allocation3 + $0xc] sm:$0xf]
        %v285 = vld [vmem:[#allocation3 + $0x10] sm:$0xf]
        %v286 = vld [vmem:[#allocation3 + $0x14] sm:$0xf]
        %v287 = vld [vmem:[#allocation3 + $0x18] sm:$0xf]
        %v288 = vld [vmem:[#allocation3 + $0x1c] sm:$0xf]
        %s289 = scalar_lea.vmem [#allocation3], 32
        %v290 = vld [vmem:[%s289] sm:$0xf]
        %v291 = vld [vmem:[%s289 + $0x4] sm:$0xf]
        %v292 = vld [vmem:[%s289 + $0x8] sm:$0xf]
        %v293 = vld [vmem:[%s289 + $0xc] sm:$0xf]
        %v294 = vld [vmem:[%s289 + $0x10] sm:$0xf]
        %v295 = vld [vmem:[%s289 + $0x14] sm:$0xf]
        %v296 = vld [vmem:[%s289 + $0x18] sm:$0xf]
        %v297 = vld [vmem:[%s289 + $0x1c] sm:$0xf]
        %v301 = vunpack.c.l.b16 %v277
        %v302 = vunpack.c.l.b16 %v278
        %v303 = vunpack.c.l.b16 %v279
        %v304 = vpack.c.b16 %v302, %v301
        %v305 = vpack.c.b16 %v303, %v303
        %vm306 = vsmask.f32 7424
        %v308 = vshrl.u32 %v304, 16
        %v310 = vshll.u32 %v304, 16
        %v312 = vrot.slane %v310, 1
        %v313 = vor.u32 %v308, %v312
        %v315 = vshll.u32 %v305, 16
        %v317 = vrot.slane %v315, 1
        %v318 = vsel %vm306, %v313, %v317
        %v327 = vunpack.c.l.b16 %v290
        %v328 = vunpack.c.l.b16 %v291
        %v329 = vunpack.c.l.b16 %v292
        %v330 = vunpack.c.l.b16 %v293
        %v331 = vunpack.c.l.b16 %v294
        %v332 = vunpack.c.l.b16 %v295
        %v333 = vunpack.c.l.b16 %v296
        %v334 = vunpack.c.l.b16 %v297
        %v335 = vpack.c.b16 %v328, %v327
        %v336 = vpack.c.b16 %v330, %v329
        %v337 = vpack.c.b16 %v332, %v331
        %v338 = vpack.c.b16 %v334, %v333
        %vm343 = vcmask 523264
        %v345 = vsel %vm343, %v318, 0
        %347 = vmatpush.bf16.msra.mxu0 0
        %348 = vmatpush.bf16.msra.mxu0 0
        %349 = vmatpush.bf16.msra.mxu0 0
        %350 = vmatpush.bf16.msra.mxu0 0
        %351 = vmatpush.bf16.msra.mxu0 %v338
        %352 = vmatpush.bf16.msra.mxu0 %v337
        %353 = vmatpush.bf16.msra.mxu0 %v336
        %354 = vmatpush.bf16.msra.mxu0 %v335
        %355 = vmatmul.bf16.gmra.mxu0 %v345
        %v356 = vpop.f32.mrf.mxu0
        %v357 = vadd.f32 0.0, %v356
        %v358 = vpop.f32.mrf.mxu0
        %v359 = vadd.f32 0.0, %v358
        %360 = vdwg.mxu0
        %v369 = vunpack.c.l.b16 %v281
        %v370 = vunpack.c.l.b16 %v282
        %v371 = vunpack.c.l.b16 %v283
        %v372 = vunpack.c.l.b16 %v284
        %v373 = vunpack.c.l.b16 %v285
        %v374 = vunpack.c.l.b16 %v286
        %v375 = vunpack.c.l.b16 %v287
        %v376 = vunpack.c.l.b16 %v288
        %v377 = vpack.c.b16 %v370, %v369
        %v378 = vpack.c.b16 %v372, %v371
        %v379 = vpack.c.b16 %v374, %v373
        %v380 = vpack.c.b16 %v376, %v375
        %v385 = vsel %vm343, %v304, 0
        %387 = vmatpush.bf16.msra.mxu0 0
        %388 = vmatpush.bf16.msra.mxu0 0
        %389 = vmatpush.bf16.msra.mxu0 0
        %390 = vmatpush.bf16.msra.mxu0 0
        %391 = vmatpush.bf16.msra.mxu0 %v380
        %392 = vmatpush.bf16.msra.mxu0 %v379
        %393 = vmatpush.bf16.msra.mxu0 %v378
        %394 = vmatpush.bf16.msra.mxu0 %v377
        %395 = vmatmul.bf16.gmra.mxu0 %v385
        %v396 = vpop.f32.mrf.mxu0
        %v397 = vadd.f32 %v357, %v396
        %v398 = vpop.f32.mrf.mxu0
        %v399 = vadd.f32 %v359, %v398
        %400 = vdwg.mxu0
        %s401 = scalar_lea.vmem [#allocation3], 64
        %v402 = vld [vmem:[%s401] sm:$0xf]
        %v403 = vld [vmem:[%s401 + $0x4] sm:$0xf]
        %v404 = vld [vmem:[%s401 + $0x8] sm:$0xf]
        %v405 = vld [vmem:[%s401 + $0xc] sm:$0xf]
        %v406 = vld [vmem:[%s401 + $0x10] sm:$0xf]
        %v407 = vld [vmem:[%s401 + $0x14] sm:$0xf]
        %v408 = vld [vmem:[%s401 + $0x18] sm:$0xf]
        %v409 = vld [vmem:[%s401 + $0x1c] sm:$0xf]
        %vm410 = vcmask 1046528
        %v411 = vrot.slane %v304, 1
        %v412 = vrot.slane %v305, 1
        %v413 = vsel %vm410, %v411, %v412
        %v422 = vunpack.c.l.b16 %v402
        %v423 = vunpack.c.l.b16 %v403
        %v424 = vunpack.c.l.b16 %v404
        %v425 = vunpack.c.l.b16 %v405
        %v426 = vunpack.c.l.b16 %v406
        %v427 = vunpack.c.l.b16 %v407
        %v428 = vunpack.c.l.b16 %v408
        %v429 = vunpack.c.l.b16 %v409
        %v430 = vpack.c.b16 %v423, %v422
        %v431 = vpack.c.b16 %v425, %v424
        %v432 = vpack.c.b16 %v427, %v426
        %v433 = vpack.c.b16 %v429, %v428
        %v439 = vsel %vm343, %v413, 0
        %441 = vmatpush.bf16.msra.mxu0 0
        %442 = vmatpush.bf16.msra.mxu0 0
        %443 = vmatpush.bf16.msra.mxu0 0
        %444 = vmatpush.bf16.msra.mxu0 0
        %445 = vmatpush.bf16.msra.mxu0 %v433
        %446 = vmatpush.bf16.msra.mxu0 %v432
        %447 = vmatpush.bf16.msra.mxu0 %v431
        %448 = vmatpush.bf16.msra.mxu0 %v430
        %449 = vmatmul.bf16.gmra.mxu0 %v439
        %v450 = vpop.f32.mrf.mxu0
        %v451 = vadd.f32 0.0, %v450
        %v452 = vpop.f32.mrf.mxu0
        %v453 = vadd.f32 0.0, %v452
        %454 = vdwg.mxu0
        %v455 = vadd.f32 %v397, %v451
        %v456 = vadd.f32 %v399, %v453
        %v457 = vperm.slane %v280, 0
        %v458 = vmul.f32 %v455, %v457
        %v459 = vmul.f32 %v456, %v457
        %v460 = vperm.slane %v280, 1
        %v461 = vadd.f32 %v458, %v460
        %v462 = vadd.f32 %v459, %v460
        %v463 = vmax.f32 %v461, 0.0
        %v464 = vmax.f32 %v462, 0.0
        %vm465 = vcmask 1040384
        %vm466 = vsmask.f32 256
        %vm467 = vmand %vm465, %vm466
        %v468 = vld [vmem:[#allocation2] sm:$0x1]
        %v469 = vsel %vm467, 0, %v468
        %470 = vst [vmem:[#allocation2] sm:$0x1] %v469
        %vm471 = vsmask.f32 7938
        %vm472 = vmand %vm465, %vm471
        %v473 = vld [vmem:[#allocation2 + $0x8] sm:$0x1]
        %v474 = vsel %vm472, 0, %v473
        %475 = vst [vmem:[#allocation2 + $0x8] sm:$0x1] %v474
        %v476 = vpack.c.bf16 %v463, %v463
        %v477 = vpack.c.bf16 %v464, %v464
        %vm478 = vsmask.f32 4368
        %vm479 = vmor %vm466, %vm478
        %v481 = vshrl.u32 %v476, 16
        %v483 = vrot.slane %v481, 7
        %v484 = vshll.u32 %v476, 16
        %v486 = vor.u32 %v483, %v484
        %v487 = vrot.slane %v483, 4
        %v489 = vshrl.u32 %v477, 16
        %v491 = vrot.slane %v489, 7
        %v492 = vshll.u32 %v477, 16
        %v494 = vor.u32 %v491, %v492
        %v495 = vsel %vm479, %v487, %v494
        %v496 = vrot.slane %v491, 4
        %vm500 = vcmask 1043456
        %vm501 = vmand %vm500, %vm471
        %v502 = vld [vmem:[#allocation2] sm:$0xf]
        %v503 = vsel %vm501, %v486, %v502
        %504 = vst [vmem:[#allocation2] sm:$0xf] %v503
        %505 = vst [vmem:[#allocation2 + $0x4] sm:$0xf] %v495
        %v506 = vld [vmem:[#allocation2 + $0x8] sm:$0x1]
        %v507 = vsel %vm467, %v496, %v506
        %508 = vst [vmem:[#allocation2 + $0x8] sm:$0x1] %v507
        %v509 = vld [vmem:[#allocation2] sm:$0xf]
        %v510 = vld [vmem:[#allocation2 + $0x4] sm:$0xf]
        %v511 = vld [vmem:[#allocation2 + $0x8] sm:$0x1]
        %v512 = vld [vmem:[#allocation5] sm:$0xf]
        %v513 = vld [vmem:[#allocation5 + $0x4] sm:$0xf]
        %v514 = vld [vmem:[#allocation5 + $0x8] sm:$0xf]
        %v515 = vld [vmem:[#allocation5 + $0xc] sm:$0xf]
        %v516 = vld [vmem:[#allocation5 + $0x10] sm:$0xf]
        %v517 = vld [vmem:[#allocation5 + $0x14] sm:$0xf]
        %v518 = vld [vmem:[#allocation5 + $0x18] sm:$0xf]
        %v519 = vld [vmem:[#allocation5 + $0x1c] sm:$0xf]
        %v520 = vld [vmem:[#allocation5 + $0x20] sm:$0xf]
        %v521 = vld [vmem:[#allocation5 + $0x24] sm:$0xf]
        %v522 = vld [vmem:[#allocation5 + $0x28] sm:$0xf]
        %v523 = vld [vmem:[#allocation5 + $0x2c] sm:$0xf]
        %v524 = vld [vmem:[#allocation5 + $0x30] sm:$0xf]
        %v525 = vld [vmem:[#allocation5 + $0x34] sm:$0xf]
        %v526 = vld [vmem:[#allocation5 + $0x38] sm:$0xf]
        %v527 = vld [vmem:[#allocation5 + $0x3c] sm:$0xf]
        %s528 = scalar_lea.vmem [#allocation5], 64
        %v529 = vld [vmem:[%s528] sm:$0xf]
        %v530 = vld [vmem:[%s528 + $0x4] sm:$0xf]
        %v531 = vld [vmem:[%s528 + $0x8] sm:$0xf]
        %v532 = vld [vmem:[%s528 + $0xc] sm:$0xf]
        %v533 = vld [vmem:[%s528 + $0x10] sm:$0xf]
        %v534 = vld [vmem:[%s528 + $0x14] sm:$0xf]
        %v535 = vld [vmem:[%s528 + $0x18] sm:$0xf]
        %v536 = vld [vmem:[%s528 + $0x1c] sm:$0xf]
        %v537 = vld [vmem:[%s528 + $0x20] sm:$0xf]
        %v538 = vld [vmem:[%s528 + $0x24] sm:$0xf]
        %v539 = vld [vmem:[%s528 + $0x28] sm:$0xf]
        %v540 = vld [vmem:[%s528 + $0x2c] sm:$0xf]
        %v541 = vld [vmem:[%s528 + $0x30] sm:$0xf]
        %v542 = vld [vmem:[%s528 + $0x34] sm:$0xf]
        %v543 = vld [vmem:[%s528 + $0x38] sm:$0xf]
        %v544 = vld [vmem:[%s528 + $0x3c] sm:$0xf]
        %v548 = vunpack.c.l.b16 %v509
        %v549 = vunpack.c.l.b16 %v510
        %v550 = vunpack.c.l.b16 %v511
        %v551 = vpack.c.b16 %v549, %v548
        %v552 = vpack.c.b16 %v550, %v550
        %v554 = vshrl.u32 %v551, 16
        %v556 = vshll.u32 %v551, 16
        %v558 = vrot.slane %v556, 1
        %v559 = vor.u32 %v554, %v558
        %v561 = vshll.u32 %v552, 16
        %v563 = vrot.slane %v561, 1
        %v564 = vsel %vm306, %v559, %v563
        %v582 = vunpack.c.l.b16 %v529
        %v583 = vunpack.c.l.b16 %v530
        %v584 = vunpack.c.l.b16 %v531
        %v585 = vunpack.c.l.b16 %v532
        %v586 = vunpack.c.l.b16 %v533
        %v587 = vunpack.c.l.b16 %v534
        %v588 = vunpack.c.l.b16 %v535
        %v589 = vunpack.c.l.b16 %v536
        %v590 = vunpack.c.l.b16 %v537
        %v591 = vunpack.c.l.b16 %v538
        %v592 = vunpack.c.l.b16 %v539
        %v593 = vunpack.c.l.b16 %v540
        %v594 = vunpack.c.l.b16 %v541
        %v595 = vunpack.c.l.b16 %v542
        %v596 = vunpack.c.l.b16 %v543
        %v597 = vunpack.c.l.b16 %v544
        %v598 = vpack.c.b16 %v583, %v582
        %v599 = vpack.c.b16 %v585, %v584
        %v600 = vpack.c.b16 %v587, %v586
        %v601 = vpack.c.b16 %v589, %v588
        %v602 = vpack.c.b16 %v591, %v590
        %v603 = vpack.c.b16 %v593, %v592
        %v604 = vpack.c.b16 %v595, %v594
        %v605 = vpack.c.b16 %v597, %v596
        %614 = vmatpush.bf16.msra.mxu0 %v605
        %615 = vmatpush.bf16.msra.mxu0 %v604
        %616 = vmatpush.bf16.msra.mxu0 %v603
        %617 = vmatpush.bf16.msra.mxu0 %v602
        %618 = vmatpush.bf16.msra.mxu0 %v601
        %619 = vmatpush.bf16.msra.mxu0 %v600
        %620 = vmatpush.bf16.msra.mxu0 %v599
        %621 = vmatpush.bf16.msra.mxu0 %v598
        %622 = vmatmul.bf16.gmra.mxu0 %v564
        %v623 = vpop.f32.mrf.mxu0
        %v624 = vadd.f32 0.0, %v623
        %v625 = vpop.f32.mrf.mxu0
        %v626 = vadd.f32 0.0, %v625
        %627 = vdwg.mxu0
        %v645 = vunpack.c.l.b16 %v512
        %v646 = vunpack.c.l.b16 %v513
        %v647 = vunpack.c.l.b16 %v514
        %v648 = vunpack.c.l.b16 %v515
        %v649 = vunpack.c.l.b16 %v516
        %v650 = vunpack.c.l.b16 %v517
        %v651 = vunpack.c.l.b16 %v518
        %v652 = vunpack.c.l.b16 %v519
        %v653 = vunpack.c.l.b16 %v520
        %v654 = vunpack.c.l.b16 %v521
        %v655 = vunpack.c.l.b16 %v522
        %v656 = vunpack.c.l.b16 %v523
        %v657 = vunpack.c.l.b16 %v524
        %v658 = vunpack.c.l.b16 %v525
        %v659 = vunpack.c.l.b16 %v526
        %v660 = vunpack.c.l.b16 %v527
        %v661 = vpack.c.b16 %v646, %v645
        %v662 = vpack.c.b16 %v648, %v647
        %v663 = vpack.c.b16 %v650, %v649
        %v664 = vpack.c.b16 %v652, %v651
        %v665 = vpack.c.b16 %v654, %v653
        %v666 = vpack.c.b16 %v656, %v655
        %v667 = vpack.c.b16 %v658, %v657
        %v668 = vpack.c.b16 %v660, %v659
        %677 = vmatpush.bf16.msra.mxu0 %v668
        %678 = vmatpush.bf16.msra.mxu0 %v667
        %679 = vmatpush.bf16.msra.mxu0 %v666
        %680 = vmatpush.bf16.msra.mxu0 %v665
        %681 = vmatpush.bf16.msra.mxu0 %v664
        %682 = vmatpush.bf16.msra.mxu0 %v663
        %683 = vmatpush.bf16.msra.mxu0 %v662
        %684 = vmatpush.bf16.msra.mxu0 %v661
        %685 = vmatmul.bf16.gmra.mxu0 %v551
        %v686 = vpop.f32.mrf.mxu0
        %v687 = vadd.f32 %v624, %v686
        %v688 = vpop.f32.mrf.mxu0
        %v689 = vadd.f32 %v626, %v688
        %690 = vdwg.mxu0
        %s691 = scalar_lea.vmem [#allocation5], 128
        %v692 = vld [vmem:[%s691] sm:$0xf]
        %v693 = vld [vmem:[%s691 + $0x4] sm:$0xf]
        %v694 = vld [vmem:[%s691 + $0x8] sm:$0xf]
        %v695 = vld [vmem:[%s691 + $0xc] sm:$0xf]
        %v696 = vld [vmem:[%s691 + $0x10] sm:$0xf]
        %v697 = vld [vmem:[%s691 + $0x14] sm:$0xf]
        %v698 = vld [vmem:[%s691 + $0x18] sm:$0xf]
        %v699 = vld [vmem:[%s691 + $0x1c] sm:$0xf]
        %v700 = vld [vmem:[%s691 + $0x20] sm:$0xf]
        %v701 = vld [vmem:[%s691 + $0x24] sm:$0xf]
        %v702 = vld [vmem:[%s691 + $0x28] sm:$0xf]
        %v703 = vld [vmem:[%s691 + $0x2c] sm:$0xf]
        %v704 = vld [vmem:[%s691 + $0x30] sm:$0xf]
        %v705 = vld [vmem:[%s691 + $0x34] sm:$0xf]
        %v706 = vld [vmem:[%s691 + $0x38] sm:$0xf]
        %v707 = vld [vmem:[%s691 + $0x3c] sm:$0xf]
        %v708 = vrot.slane %v551, 1
        %v709 = vrot.slane %v552, 1
        %v710 = vsel %vm410, %v708, %v709
        %v728 = vunpack.c.l.b16 %v692
        %v729 = vunpack.c.l.b16 %v693
        %v730 = vunpack.c.l.b16 %v694
        %v731 = vunpack.c.l.b16 %v695
        %v732 = vunpack.c.l.b16 %v696
        %v733 = vunpack.c.l.b16 %v697
        %v734 = vunpack.c.l.b16 %v698
        %v735 = vunpack.c.l.b16 %v699
        %v736 = vunpack.c.l.b16 %v700
        %v737 = vunpack.c.l.b16 %v701
        %v738 = vunpack.c.l.b16 %v702
        %v739 = vunpack.c.l.b16 %v703
        %v740 = vunpack.c.l.b16 %v704
        %v741 = vunpack.c.l.b16 %v705
        %v742 = vunpack.c.l.b16 %v706
        %v743 = vunpack.c.l.b16 %v707
        %v744 = vpack.c.b16 %v729, %v728
        %v745 = vpack.c.b16 %v731, %v730
        %v746 = vpack.c.b16 %v733, %v732
        %v747 = vpack.c.b16 %v735, %v734
        %v748 = vpack.c.b16 %v737, %v736
        %v749 = vpack.c.b16 %v739, %v738
        %v750 = vpack.c.b16 %v741, %v740
        %v751 = vpack.c.b16 %v743, %v742
        %760 = vmatpush.bf16.msra.mxu0 %v751
        %761 = vmatpush.bf16.msra.mxu0 %v750
        %762 = vmatpush.bf16.msra.mxu0 %v749
        %763 = vmatpush.bf16.msra.mxu0 %v748
        %764 = vmatpush.bf16.msra.mxu0 %v747
        %765 = vmatpush.bf16.msra.mxu0 %v746
        %766 = vmatpush.bf16.msra.mxu0 %v745
        %767 = vmatpush.bf16.msra.mxu0 %v744
        %768 = vmatmul.bf16.gmra.mxu0 %v710
        %v769 = vpop.f32.mrf.mxu0
        %v770 = vadd.f32 0.0, %v769
        %v771 = vpop.f32.mrf.mxu0
        %v772 = vadd.f32 0.0, %v771
        %773 = vdwg.mxu0
        %v774 = vadd.f32 %v687, %v770
        %v775 = vadd.f32 %v689, %v772
        %v776 = vperm.slane %v280, 2
        %v777 = vmul.f32 %v774, %v776
        %v778 = vmul.f32 %v775, %v776
        %v779 = vperm.slane %v280, 3
        %v780 = vadd.f32 %v777, %v779
        %v781 = vadd.f32 %v778, %v779
        %v782 = vld [vmem:[%s4] sm:$0xf]
        %v783 = vld [vmem:[%s4 + $0x4] sm:$0xf]
        %v784 = vld [vmem:[%s4 + $0x8] sm:$0xf]
        %v785 = vld [vmem:[%s4 + $0xc] sm:$0xf]
        %v786 = vld [vmem:[%s4 + $0x10] sm:$0xf]
        %v787 = vld [vmem:[%s4 + $0x14] sm:$0xf]
        %v788 = vld [vmem:[%s4 + $0x18] sm:$0xf]
        %v789 = vld [vmem:[%s4 + $0x1c] sm:$0xf]
        %v798 = vunpack.c.l.b16 %v782
        %v799 = vunpack.c.l.b16 %v783
        %v800 = vunpack.c.l.b16 %v784
        %v801 = vunpack.c.l.b16 %v785
        %v802 = vunpack.c.l.b16 %v786
        %v803 = vunpack.c.l.b16 %v787
        %v804 = vunpack.c.l.b16 %v788
        %v805 = vunpack.c.l.b16 %v789
        %v806 = vpack.c.b16 %v799, %v798
        %v807 = vpack.c.b16 %v801, %v800
        %v808 = vpack.c.b16 %v803, %v802
        %v809 = vpack.c.b16 %v805, %v804
        %814 = vmatpush.bf16.msra.mxu0 0
        %815 = vmatpush.bf16.msra.mxu0 0
        %816 = vmatpush.bf16.msra.mxu0 0
        %817 = vmatpush.bf16.msra.mxu0 0
        %818 = vmatpush.bf16.msra.mxu0 %v809
        %819 = vmatpush.bf16.msra.mxu0 %v808
        %820 = vmatpush.bf16.msra.mxu0 %v807
        %821 = vmatpush.bf16.msra.mxu0 %v806
        %822 = vmatmul.bf16.gmra.mxu0 %v345
        %v823 = vpop.f32.mrf.mxu0
        %v824 = vadd.f32 0.0, %v823
        %v825 = vpop.f32.mrf.mxu0
        %v826 = vadd.f32 0.0, %v825
        %827 = vdwg.mxu0
        %v828 = vadd.f32 %v780, %v824
        %v829 = vadd.f32 %v781, %v826
        %v830 = vmax.f32 %v828, 0.0
        %v831 = vmax.f32 %v829, 0.0
        %v832 = vld [vmem:[%s275] sm:$0x1]
        %v833 = vsel %vm467, 0, %v832
        %834 = vst [vmem:[%s275] sm:$0x1] %v833
        %v835 = vld [vmem:[%s275 + $0x8] sm:$0x1]
        %v836 = vsel %vm472, 0, %v835
        %837 = vst [vmem:[%s275 + $0x8] sm:$0x1] %v836
        %v838 = vpack.c.bf16 %v830, %v830
        %v839 = vpack.c.bf16 %v831, %v831
        %v841 = vshrl.u32 %v838, 16
        %v843 = vrot.slane %v841, 7
        %v844 = vshll.u32 %v838, 16
        %v846 = vor.u32 %v843, %v844
        %v847 = vrot.slane %v843, 4
        %v849 = vshrl.u32 %v839, 16
        %v851 = vrot.slane %v849, 7
        %v852 = vshll.u32 %v839, 16
        %v854 = vor.u32 %v851, %v852
        %v855 = vsel %vm479, %v847, %v854
        %v856 = vrot.slane %v851, 4
        %v860 = vld [vmem:[%s275] sm:$0xf]
        %v861 = vsel %vm501, %v846, %v860
        %862 = vst [vmem:[%s275] sm:$0xf] %v861
        %863 = vst [vmem:[%s275 + $0x4] sm:$0xf] %v855
        %v864 = vld [vmem:[%s275 + $0x8] sm:$0x1]
        %v865 = vsel %vm467, %v856, %v864
        %866 = vst [vmem:[%s275 + $0x8] sm:$0x1] %v865
        %p867 = scmp.lt.s32.totalorder %s18, 1
        %s868 = scalar_select %p867, %s18, 1
        %s869 = smul.addr %s868, 3
        %s870 = smul.addr %s869, 4
        %s871 = scalar_lea.vmem %s5, %s870
        // Predicated region
        $region49: #{tpu_custom_call.1} parent=39 // pred_check
          %p872 = pneg %p151
        $region50: #{tpu_custom_call.1} parent=39 // pred_check_branch
          %874 = sbr.rel (%p872) target = $region52
        $region51: #{tpu_custom_call.1} parent=39 // pred_region
          _
        $region52: #{tpu_custom_call.1} parent=39 // pred_fallthru
          _
      $region40: #{tpu_custom_call.1} parent=5 // pred_fallthru
        _
      %p875 = scmp.le.s32.totalorder 2, %s13
      // Predicated region
      $region53: #{tpu_custom_call.1} parent=5 // pred_check
        %p876 = pneg %p875
      $region54: #{tpu_custom_call.1} parent=5 // pred_check_branch
        %878 = sbr.rel (%p876) target = $region56
      $region55: #{tpu_custom_call.1} parent=5 // pred_region
        %s879 = ssub.s32 %s13, 2
        // Predicated region
        $region57: #{tpu_custom_call.1} parent=55 // pred_check
          %p880 = pneg %p157
        $region58: #{tpu_custom_call.1} parent=55 // pred_check_branch
          %882 = sbr.rel (%p880) target = $region60
        $region59: #{tpu_custom_call.1} parent=55 // pred_region
          %p883 = scmp.lt.s32.totalorder %s19, 1
          %s884 = scalar_select %p883, %s19, 1
          %s885 = smul.addr %s884, 3
          %s886 = smul.addr %s885, 4
          %s887 = scalar_lea.vmem %s5, %s886
        $region60: #{tpu_custom_call.1} parent=55 // pred_fallthru
          _
      $region56: #{tpu_custom_call.1} parent=5 // pred_fallthru
        _
    $region6: #{tpu_custom_call.1} parent=1 // loop_footer
      %s17 = sadd.s32 1, %s13
    $region7: #{tpu_custom_call.1} parent=1 // loop_footer_branch
      %12 = sbr.rel target = $region3
    $region8: #{tpu_custom_call.1} parent=1 // loop_exit
      _
    %888 = vsyncpa [#allocation4], 1
    %s889 = scalar_lea.sflag [#allocation4], 1
    %890 = vsyncpa %s889, 1
    %891 = vsyncpa [#allocation6], 1

</llo_original>
